<compile_context>
chip_gen: v5e
topology: v5e:2x2
jax: 0.10.0
libtpu: 0.0.40
codegen_flags: <defaults>
</compile_context>

<pallas_src>
import functools

import jax
import jax.numpy as jnp
from jax.experimental import pallas as pl
from jax.experimental.pallas import tpu as pltpu


def _cdiv(a, b):
    return (a + b - 1) // b


def _softplus(z):
    # Stable softplus: max(z, 0) + log1p(exp(-|z|)).
    return jnp.maximum(z, 0.0) + jnp.log1p(jnp.exp(-jnp.abs(z)))


def _tree_sum(chunks):
    # Pairwise (tree) sum of equal-shaped arrays: pure VPU adds, log depth.
    while len(chunks) > 1:
        nxt = [chunks[i] + chunks[i + 1] for i in range(0, len(chunks) - 1, 2)]
        if len(chunks) % 2:
            nxt.append(chunks[-1])
        chunks = nxt
    return chunks[0]


def _fold_sublanes(arr):
    # (rows, L) -> (8, L): sum vreg-aligned 8-sublane slabs on the VPU only
    # (no per-step XLU reduce; rows is a static multiple of 8).
    rows = arr.shape[0]
    return _tree_sum([arr[r:r + 8, :] for r in range(0, rows, 8)])


# --------------------------------------------------------------------------- #
# Variant 1: b == 0 (module default). Pure element-wise BCE-with-logits pass,
# gridded over lane-dense (tile_rows, 128) blocks. Each tile writes an (8, 128)
# unscaled partial slab; the (tiny) final reduce + scaling happens outside.
# --------------------------------------------------------------------------- #
def _bce_only_kernel(x_ref, t_ref, out_ref):
    x = x_ref[...]                       # (tile_rows, 128), padded with +30
    t = t_ref[...]                       # (tile_rows, 128), padded with 1.0
    # log p = -softplus(-x); log(1-p) = log p - x
    #   => t*log p + (1-t)*log(1-p) = logsig - (1-t)*x     (pad terms ~ -9e-14)
    logsig = -_softplus(-x)
    terms = logsig - (1.0 - t) * x
    out_ref[...] = _fold_sublanes(terms)  # (8, 128) vreg-aligned store, VPU only


# --------------------------------------------------------------------------- #
# Variant 2: b != 0. BCE + Cox partial likelihood.
# Grid: (i-tiles over lanes ["parallel"], j-tiles over sublanes ["arbitrary"]).
# rowsum[i] = sum_j sigmoid(x_j) * (s_i <= s_j) accumulates in an (8, ti) VMEM
# scratch; the N x N risk matrix is never materialized.
# --------------------------------------------------------------------------- #
def _bce_cox_kernel(s_row_ref, x_row_ref, t_row_ref, s_col_ref, sig_col_ref,
                    out_ref, rowsum_ref, *, a, b, n, tj):
    j = pl.program_id(1)

    @pl.when(j == 0)
    def _():
        rowsum_ref[...] = jnp.zeros_like(rowsum_ref)

    s_row = s_row_ref[...]                               # (1, ti)
    off = pl.multiple_of(j * tj, 8)
    s_col = s_col_ref[pl.ds(off, tj), :]                 # (tj, 1) from resident col
    sig_col = sig_col_ref[pl.ds(off, tj), :]             # (tj, 1), sigmoid hoisted

    # Build contributions 8 j-rows at a time: VPU select + add only in the hot
    # loop; padded j rows carry sigmoid == 0 so they never contribute.
    chunks = []
    for r in range(0, tj, 8):
        m = s_row <= s_col[r:r + 8, :]                   # (8, ti)
        chunks.append(jnp.where(m, jnp.broadcast_to(sig_col[r:r + 8, :], m.shape), 0.0))
    rowsum_ref[...] += _tree_sum(chunks)                 # (8, ti)

    @pl.when(j == pl.num_programs(1) - 1)
    def _():
        rowsum = jnp.sum(rowsum_ref[...], axis=0, keepdims=True)   # (1, ti)
        x = x_row_ref[...]                               # (1, ti), padded with -30
        t = t_row_ref[...]                               # (1, ti), padded with 0
        logsig = -_softplus(-x)
        bce_terms = logsig - (1.0 - t) * x               # pad lanes ~ 0
        cox_terms = (logsig - jnp.log(rowsum)) * t       # pad lanes exactly 0
        # Lane-dense per-i-tile partial; final (tiny) reduce happens outside.
        out_ref[...] = (jnp.float32(-a / n) * bce_terms
                        + jnp.float32(-b / n) * cox_terms)


# --------------------------------------------------------------------------- #
# Wrapper
# --------------------------------------------------------------------------- #
def loss_pallas(survtime, inputs, targets, a=1.0, b=0.0,
                tile_rows=512, tile_i=512, tile_j=512):
    """Pallas equivalent of Loss(a, b).forward(survtime, inputs, targets)."""
    s = survtime.reshape(-1).astype(jnp.float32)
    x = inputs.reshape(-1).astype(jnp.float32)
    t = targets.reshape(-1).astype(jnp.float32)
    n = int(s.shape[0])
    a = float(a)
    b = float(b)

    if b == 0.0:
        # Compile-time gate: all O(N^2) Cox work is skipped entirely.
        lanes = 128
        rows_needed = _cdiv(n, lanes)
        tr = min(int(tile_rows), 8 * _cdiv(rows_needed, 8))
        tr = max(8, 8 * (tr // 8))                        # multiple of 8 sublanes
        rows_total = tr * _cdiv(rows_needed, tr)
        num_tiles = rows_total // tr
        pad = rows_total * lanes - n
        # Pad so padded terms evaluate to ~0 exactly (no in-kernel mask):
        #   x = +30, t = 1  =>  term = log(sigmoid(30)) ~ -9e-14.
        x_d = jnp.pad(x, (0, pad), constant_values=30.0).reshape(rows_total, lanes)
        t_d = jnp.pad(t, (0, pad), constant_values=1.0).reshape(rows_total, lanes)
        partials = pl.pallas_call(
            _bce_only_kernel,
            out_shape=jax.ShapeDtypeStruct((8 * num_tiles, lanes), jnp.float32),
            grid=(num_tiles,),
            in_specs=[pl.BlockSpec((tr, lanes), lambda k: (k, 0)),
                      pl.BlockSpec((tr, lanes), lambda k: (k, 0))],
            out_specs=pl.BlockSpec((8, lanes), lambda k: (k, 0)),
            compiler_params=pltpu.CompilerParams(
                dimension_semantics=("parallel",)),
            cost_estimate=pl.CostEstimate(
                flops=8 * n, transcendentals=2 * n,
                bytes_accessed=8 * n + 4096 * num_tiles),
        )(x_d, t_d)
        return jnp.float32(-a / n) * jnp.sum(partials)

    # ---- b != 0: 2-D tiled Cox + BCE -------------------------------------- #
    ti = min(int(tile_i), 128 * _cdiv(n, 128))
    ti = max(128, 128 * (ti // 128))                      # lane-aligned i tile
    ni = ti * _cdiv(n, ti)
    num_i = ni // ti

    tj = min(int(tile_j), 8 * _cdiv(n, 8))
    tj = max(8, 8 * (tj // 8))                            # sublane-aligned j tile
    nj = tj * _cdiv(n, tj)
    num_j = nj // tj

    pad_i = ni - n
    pad_j = nj - n
    s_min = jnp.min(s) - 1.0   # pad survtimes sit below every real survtime

    # i (lane) axis padding: t = 0 zeroes the Cox term, x = -30 makes the BCE
    # term ~0, and s = min-1 keeps rowsum of pad lanes positive (finite log).
    s_row = jnp.concatenate([s, jnp.broadcast_to(s_min, (pad_i,))]).reshape(1, ni)
    x_row = jnp.pad(x, (0, pad_i), constant_values=-30.0).reshape(1, ni)
    t_row = jnp.pad(t, (0, pad_i)).reshape(1, ni)

    # j (sublane) axis padding: sigmoid = 0 removes pad rows from every risk set.
    sig = jax.nn.sigmoid(x)                               # hoisted out of O(N^2) loop
    s_col = jnp.concatenate([s, jnp.broadcast_to(s_min, (pad_j,))]).reshape(nj, 1)
    sig_col = jnp.pad(sig, (0, pad_j)).reshape(nj, 1)

    partials = pl.pallas_call(
        functools.partial(_bce_cox_kernel, a=a, b=b, n=n, tj=tj),
        out_shape=jax.ShapeDtypeStruct((num_i, ti), jnp.float32),
        grid=(num_i, num_j),
        in_specs=[
            pl.BlockSpec((1, ti), lambda i, j: (0, i)),   # s_row tile
            pl.BlockSpec((1, ti), lambda i, j: (0, i)),   # x_row tile
            pl.BlockSpec((1, ti), lambda i, j: (0, i)),   # t_row tile
            pl.BlockSpec((nj, 1), lambda i, j: (0, 0)),   # s_col, resident
            pl.BlockSpec((nj, 1), lambda i, j: (0, 0)),   # sigmoid col, resident
        ],
        out_specs=pl.BlockSpec((1, ti), lambda i, j: (i, 0)),
        scratch_shapes=[pltpu.VMEM((8, ti), jnp.float32)],
        compiler_params=pltpu.CompilerParams(
            dimension_semantics=("parallel", "arbitrary")),
        cost_estimate=pl.CostEstimate(
            flops=3 * n * n + 16 * n, transcendentals=4 * n, bytes_accessed=24 * n),
    )(s_row, x_row, t_row, s_col, sig_col)
    return jnp.sum(partials)


def reference_loss(survtime, inputs, targets, a=1.0, b=0.0):
    """Plain-JAX mirror of the PyTorch forward (for correctness checking)."""
    s = survtime.reshape(-1).astype(jnp.float32)
    x = inputs.reshape(-1).astype(jnp.float32)
    t = targets.reshape(-1).astype(jnp.float32)
    p = jax.nn.sigmoid(x)
    bce = -jnp.mean(t * jnp.log(p) + (1.0 - t) * jnp.log(1.0 - p))
    R = (s[:, None] <= s[None, :]).astype(jnp.float32)
    rowsum = jnp.sum(p[None, :] * R, axis=1)
    cox = -jnp.mean((jnp.log(p) - jnp.log(rowsum)) * t)
    return a * bce + b * cox


if __name__ == "__main__":
    key = jax.random.PRNGKey(0)
    keys = jax.random.split(key, 9)

    # Small batch of risk scores (the module operates on flattened vectors).
    N = 8
    survtime = jax.random.uniform(keys[0], (N,), dtype=jnp.float32) * 10.0
    inputs = jax.random.normal(keys[1], (N,), dtype=jnp.float32)              # hazard logits
    targets = (jax.random.uniform(keys[2], (N,)) < 0.5).astype(jnp.float32)   # censor / labels

    # 1) Module defaults (a=1, b=0): Cox block compiled out, gridded BCE pass.
    out0 = jax.block_until_ready(loss_pallas(survtime, inputs, targets, a=1.0, b=0.0))
    ref0 = reference_loss(survtime, inputs, targets, a=1.0, b=0.0)
    assert jnp.allclose(out0, ref0, atol=1e-5, rtol=1e-5), (out0, ref0)

    # 2) Cox branch enabled (single i/j tile).
    out1 = jax.block_until_ready(loss_pallas(survtime, inputs, targets, a=1.0, b=0.5))
    ref1 = reference_loss(survtime, inputs, targets, a=1.0, b=0.5)
    assert jnp.allclose(out1, ref1, atol=1e-5, rtol=1e-5), (out1, ref1)

    # 3) Cox branch across multiple i and j tiles (accumulator + both paddings).
    N2 = 300
    survtime2 = jax.random.uniform(keys[3], (N2,), dtype=jnp.float32) * 10.0
    inputs2 = jax.random.normal(keys[4], (N2,), dtype=jnp.float32)
    targets2 = (jax.random.uniform(keys[5], (N2,)) < 0.5).astype(jnp.float32)
    out2 = jax.block_until_ready(
        loss_pallas(survtime2, inputs2, targets2, a=0.7, b=0.3, tile_i=128, tile_j=64))
    ref2 = reference_loss(survtime2, inputs2, targets2, a=0.7, b=0.3)
    assert jnp.allclose(out2, ref2, atol=1e-5, rtol=1e-5), (out2, ref2)

    # 4) Gridded BCE path across several row tiles.
    N3 = 3000
    survtime3 = jax.random.uniform(keys[6], (N3,), dtype=jnp.float32) * 10.0
    inputs3 = jax.random.normal(keys[7], (N3,), dtype=jnp.float32)
    targets3 = (jax.random.uniform(keys[8], (N3,)) < 0.5).astype(jnp.float32)
    out3 = jax.block_until_ready(
        loss_pallas(survtime3, inputs3, targets3, a=1.3, b=0.0, tile_rows=8))
    ref3 = reference_loss(survtime3, inputs3, targets3, a=1.3, b=0.0)
    assert jnp.allclose(out3, ref3, atol=1e-5, rtol=1e-5), (out3, ref3)

    print("KERNEL_OK")
</pallas_src>

<mosaic_0001>
module attributes {stable_mosaic.version = 11 : i64} {
  func.func @_bce_only_kernel(%arg0: i32, %arg1: memref<8x128xf32, #tpu.memory_space<vmem>>, %arg2: memref<8x128xf32, #tpu.memory_space<vmem>>, %arg3: memref<8x128xf32, #tpu.memory_space<vmem>>) attributes {dimension_semantics = [#tpu.dimension_semantics<parallel>], iteration_bounds = array<i64: 1>, scalar_prefetch = 0 : i64, scratch_operands = 0 : i64, tpu.core_type = #tpu.core_type<tc>, window_params = [{transform_indices = @transform_0, window_bounds = array<i64: 8, 128>}, {transform_indices = @transform_1, window_bounds = array<i64: 8, 128>}, {transform_indices = @transform_2, window_bounds = array<i64: 8, 128>}]} {
    %c0 = arith.constant 0 : index
    %c0_0 = arith.constant 0 : index
    %0 = vector.load %arg1[%c0, %c0_0] : memref<8x128xf32, #tpu.memory_space<vmem>>, vector<8x128xf32>
    %c0_1 = arith.constant 0 : index
    %c0_2 = arith.constant 0 : index
    %1 = vector.load %arg2[%c0_1, %c0_2] : memref<8x128xf32, #tpu.memory_space<vmem>>, vector<8x128xf32>
    %cst = arith.constant 0.000000e+00 : f32
    %2 = vector.broadcast %cst : f32 to vector<8x128xf32>
    %3 = arith.subf %2, %0 : vector<8x128xf32>
    %cst_3 = arith.constant 0.000000e+00 : f32
    %4 = vector.broadcast %cst_3 : f32 to vector<8x128xf32>
    %5 = arith.maximumf %3, %4 : vector<8x128xf32>
    %6 = math.absf %3 : vector<8x128xf32>
    %cst_4 = arith.constant 0.000000e+00 : f32
    %7 = vector.broadcast %cst_4 : f32 to vector<8x128xf32>
    %8 = arith.subf %7, %6 : vector<8x128xf32>
    %9 = math.exp %8 : vector<8x128xf32>
    %10 = math.log1p %9 : vector<8x128xf32>
    %11 = arith.addf %5, %10 : vector<8x128xf32>
    %cst_5 = arith.constant 0.000000e+00 : f32
    %12 = vector.broadcast %cst_5 : f32 to vector<8x128xf32>
    %13 = arith.subf %12, %11 : vector<8x128xf32>
    %cst_6 = arith.constant 1.000000e+00 : f32
    %14 = vector.broadcast %cst_6 : f32 to vector<8x128xf32>
    %15 = arith.subf %14, %1 : vector<8x128xf32>
    %16 = arith.mulf %15, %0 : vector<8x128xf32>
    %17 = arith.subf %13, %16 : vector<8x128xf32>
    %c0_7 = arith.constant 0 : index
    %c0_8 = arith.constant 0 : index
    %18 = vector.load %arg3[%c0_7, %c0_8] : memref<8x128xf32, #tpu.memory_space<vmem>>, vector<8x128xf32>
    tpu.vector_store %arg3[%c0_7, %c0_8], %17 {strides = array<i32>} : memref<8x128xf32, #tpu.memory_space<vmem>>, vector<8x128xf32>,
    return
  }
  func.func @transform_0(%arg0: i32) -> (i32, i32) {
    %c0_i32 = arith.constant 0 : i32
    %c0_i32_0 = arith.constant 0 : i32
    return %arg0, %c0_i32 : i32, i32
  }
  func.func @transform_1(%arg0: i32) -> (i32, i32) {
    %c0_i32 = arith.constant 0 : i32
    %c0_i32_0 = arith.constant 0 : i32
    return %arg0, %c0_i32 : i32, i32
  }
  func.func @transform_2(%arg0: i32) -> (i32, i32) {
    %c0_i32 = arith.constant 0 : i32
    %c0_i32_0 = arith.constant 0 : i32
    return %arg0, %c0_i32 : i32, i32
  }
}

</mosaic_0001>

<llo_original>
// kernel: tpu_custom_call.1
$region0: #{tpu_custom_call.1}
  #allocation0 [shape = 'u32[]', space=smem, size = 0x4, offset = 0x4, fixed_abs, tag = 'smem constant byte address 0x4 - core index']
  #allocation1 [shape = 'u32[72,128]{1,0:T(1,128)}', space=vmem, size = 0x9000, scoped, tag = 'internal scratch']
  %s0 = inlined_call_operand.hbm [shape: f32[8,128], index: 0, kind: input, shape index: {}]
  %s1 = inlined_call_operand.hbm [shape: f32[8,128], index: 1, kind: input, shape index: {}]
  %s2 = inlined_call_operand.hbm [shape: f32[8,128], index: 2, kind: output, shape index: {}]
  %s3 = sld [smem:[#allocation0]]
  $region26: #{tpu_custom_call.1} parent=0
    _
  %s5 = ssub.s32 1, %s3
  %s6 = scalar_select 0, %s5, %s3
  $region1: #{tpu_custom_call.1} parent=0
    #allocation2 [shape = 'u8[4096]{0}', space=vmem, size = 0x1000, scoped, tag = 'input window, operand 0, single buffered']
    #allocation3 [shape = 's32[1]{0}', space=sflag, size = 0x4, scoped, tag = 'scoped memory for tpu_custom_call.1']
    #allocation4 [shape = 's32[1]{0}', space=sflag, size = 0x4, scoped, tag = 'scoped memory for tpu_custom_call.1']
    #allocation5 [shape = 'u8[4096]{0}', space=vmem, size = 0x1000, scoped, tag = 'input window, operand 1, single buffered']
    #allocation6 [shape = 's32[1]{0}', space=sflag, size = 0x4, scoped, tag = 'scoped memory for tpu_custom_call.1']
    #allocation7 [shape = 'u8[4096]{0}', space=vmem, size = 0x1000, scoped, tag = 'output window, operand 0, single buffered']
    %7 = vsyncpa [#allocation3], 0
    %8 = vsyncpa [#allocation6], 0
    %9 = vsyncpa [#allocation4], 0
    // Predicated region
    $region2: #{tpu_custom_call.1} parent=1 // pred_check
      _
    $region3: #{tpu_custom_call.1} parent=1 // pred_check_branch
      %11 = sbr.rel (0) target = $region5
    $region4: #{tpu_custom_call.1} parent=1 // pred_region
      %13 = vsyncadd [#allocation3], 0
      %s15 = sshll.u32 %s0, 4
      %s16 = int_to_ptr.hbm [resolvable:$true] %s15
      %s17 = sshll.u32 [#allocation2], 4
      %s18 = int_to_ptr.vmem [resolvable:$true] %s17
      %20 = dma.hbm_to_vmem [thread:$0]  %s16, 128, %s18, [#allocation3]
    $region5: #{tpu_custom_call.1} parent=1 // pred_fallthru
      _
    // Predicated region
    $region6: #{tpu_custom_call.1} parent=1 // pred_check
      _
    $region7: #{tpu_custom_call.1} parent=1 // pred_check_branch
      %22 = sbr.rel (0) target = $region9
    $region8: #{tpu_custom_call.1} parent=1 // pred_region
      %24 = vsyncadd [#allocation6], 0
      %s26 = sshll.u32 %s1, 4
      %s27 = int_to_ptr.hbm [resolvable:$true] %s26
      %s28 = sshll.u32 [#allocation5], 4
      %s29 = int_to_ptr.vmem [resolvable:$true] %s28
      %31 = dma.hbm_to_vmem [thread:$0]  %s27, 128, %s29, [#allocation6]
    $region9: #{tpu_custom_call.1} parent=1 // pred_fallthru
      _
    // Predicated region
    $region10: #{tpu_custom_call.1} parent=1 // pred_check
      _
    $region11: #{tpu_custom_call.1} parent=1 // pred_check_branch
      %33 = sbr.rel (0) target = $region13
    $region12: #{tpu_custom_call.1} parent=1 // pred_region
      %35 = dma.done [#allocation3], 128
    $region13: #{tpu_custom_call.1} parent=1 // pred_fallthru
      _
    // Predicated region
    $region14: #{tpu_custom_call.1} parent=1 // pred_check
      _
    $region15: #{tpu_custom_call.1} parent=1 // pred_check_branch
      %37 = sbr.rel (0) target = $region17
    $region16: #{tpu_custom_call.1} parent=1 // pred_region
      %39 = dma.done [#allocation6], 128
    $region17: #{tpu_custom_call.1} parent=1 // pred_fallthru
      _
    %v40 = vld [vmem:[#allocation2] sm:$0xff]
    %v41 = vld [vmem:[#allocation5] sm:$0xff]
    %v42 = vsub.f32 0.0, %v40
    %v43 = vmax.f32 %v42, 0.0
    %v44 = vand.u32 2147483647, %v42
    %v45 = vsub.f32 0.0, %v44
    %v46 = vmul.f32 %v45, 1.442695
    %v47 = vpow.pop %v46
    %v48 = vadd.f32 %v47, 1.0
    %v49 = vlog2.pop %v48
    %v50 = vmul.f32 %v49, 0.6931472
    %v51 = vmul.f32 -0.5, %v47
    %v52 = vadd.f32 %v51, 1.0
    %v53 = vmul.f32 %v52, %v47
    %v54 = vand.u32 2147483647, %v47
    %vm55 = vcmp.lt.f32.partialorder %v54, 0.0004427343
    %v56 = vsel %vm55, %v53, %v50
    %v57 = vadd.f32 %v43, %v56
    %v58 = vsub.f32 0.0, %v57
    %v59 = vsub.f32 1.0, %v41
    %v60 = vmul.f32 %v59, %v40
    %v61 = vsub.f32 %v58, %v60
    %62 = vst [vmem:[#allocation7] sm:$0xff] %v61
    // Predicated region
    $region18: #{tpu_custom_call.1} parent=1 // pred_check
      _
    $region19: #{tpu_custom_call.1} parent=1 // pred_check_branch
      %64 = sbr.rel (0) target = $region21
    $region20: #{tpu_custom_call.1} parent=1 // pred_region
      %66 = vsyncadd [#allocation4], 0
      %s68 = sshll.u32 [#allocation7], 4
      %s69 = int_to_ptr.vmem [resolvable:$true] %s68
      %s70 = sshll.u32 %s2, 4
      %s71 = int_to_ptr.hbm [resolvable:$true] %s70
      %73 = dma.vmem_to_hbm [thread:$0]  %s69, 128, %s71, [#allocation4]
    $region21: #{tpu_custom_call.1} parent=1 // pred_fallthru
      _
    // Predicated region
    $region22: #{tpu_custom_call.1} parent=1 // pred_check
      _
    $region23: #{tpu_custom_call.1} parent=1 // pred_check_branch
      %75 = sbr.rel (0) target = $region25
    $region24: #{tpu_custom_call.1} parent=1 // pred_region
      %77 = dma.done [#allocation4], 128
    $region25: #{tpu_custom_call.1} parent=1 // pred_fallthru
      _
    %78 = vsyncpa [#allocation3], 1
    %79 = vsyncpa [#allocation6], 1
    %80 = vsyncpa [#allocation4], 1

</llo_original>
